<compile_context>
chip_gen: v6e
topology: v6e:2x2x1
jax: 0.10.0
libtpu: 0.0.40
codegen_flags: <defaults>
</compile_context>

<pallas_src>
import jax
import jax.numpy as jnp
from jax.experimental import pallas as pl
from jax.experimental.pallas import tpu as pltpu


def _make_dwsep_kernel(cin: int):
    def kernel(x_ref, dwt_ref, dwb_ref, pwbd_ref, pwb_ref, o_ref):
        # x_ref:    (TH+2, (W+2)*Cin)  padded input strip, (W, C) flattened on lanes
        # dwt_ref:  (9, W*Cin)         depthwise tap weights, tiled across w
        # dwb_ref:  (1, W*Cin)         depthwise bias, tiled across w
        # pwbd_ref: (W*Cin, W*Cout)    block-diagonal pointwise weights
        # pwb_ref:  (1, W*Cout)        pointwise bias, tiled across w
        # o_ref:    (TH, W*Cout)       lane-dense output strip
        th, _ = o_ref.shape
        wcin = dwt_ref.shape[1]

        # Depthwise 3x3 (stride 1): 9 per-tap ref loads accumulated on the VPU in f32.
        acc = jnp.zeros((th, wcin), jnp.float32) + dwb_ref[...].astype(jnp.float32)
        for kh in range(3):
            for kw in range(3):
                tap = x_ref[kh:kh + th, kw * cin:kw * cin + wcin].astype(jnp.float32)
                w_tap = dwt_ref[kh * 3 + kw:kh * 3 + kw + 1, :].astype(jnp.float32)
                acc = acc + tap * w_tap

        # Pointwise 1x1 as a lane-dense MXU matmul (K=W*Cin, N=W*Cout; no reshape).
        y = jnp.dot(acc, pwbd_ref[...].astype(jnp.float32),
                    preferred_element_type=jnp.float32)
        y = y + pwb_ref[...].astype(jnp.float32)
        o_ref[...] = y.astype(o_ref.dtype)

    return kernel


def _pick_tile_rows(H, W, cin, cout, budget_bytes=40 * 1024 * 1024):
    # Double-buffered input + output blocks (f32) must fit the scoped-VMEM budget,
    # sized with headroom for v7x's 64 MiB physical VMEM.
    bytes_per_row = 4 * 2 * ((W + 2) * cin + W * cout)
    return max(1, min(H, 128, max(8, budget_bytes // max(bytes_per_row, 1))))


def depthwise_separable_conv2(x_nchw, dw_w, dw_b, pw_w, pw_b):
    """x_nchw: (B, Cin, H, W) f32 -> (B, Cout, H, W) f32.

    dw_w: (Cin, 1, 3, 3), dw_b: (Cin,)     (PyTorch depthwise Conv2d layout)
    pw_w: (Cout, Cin, 1, 1), pw_b: (Cout,)
    """
    B, Cin, H, W = x_nchw.shape
    Cout = pw_w.shape[0]

    TH = _pick_tile_rows(H, W, Cin, Cout)
    n_strips = pl.cdiv(H, TH)
    H_eff = n_strips * TH

    # --- wrapper-side layout plumbing (single fused XLA pass over the activation) ---
    # NCHW -> NHWC, zero-pad (padding=1, plus bottom pad up to a multiple of TH),
    # flatten (W, C) onto the lane axis, and slice H into row strips that each
    # carry their own 2 halo rows so the kernel needs only Blocked indexing.
    # TODO(synk): fold the NCHW->NHWC transpose + pad into the kernel (or accept
    # NHWC activations upstream) to avoid this extra HBM pass over the activation.
    x = jnp.transpose(x_nchw, (0, 2, 3, 1))                            # (B, H, W, Cin)
    x = jnp.pad(x, ((0, 0), (1, 1 + (H_eff - H)), (1, 1), (0, 0)))     # (B, H_eff+2, W+2, Cin)
    xf = x.reshape(B, H_eff + 2, (W + 2) * Cin)
    row_idx = jnp.arange(n_strips)[:, None] * TH + jnp.arange(TH + 2)[None, :]
    x_strips = xf[:, row_idx, :]                                       # (B, S, TH+2, (W+2)*Cin)

    WpC = (W + 2) * Cin
    WCin = W * Cin
    WCout = W * Cout

    # Weights re-packed once for the flattened lane layout (tiny).
    dwt = jnp.transpose(dw_w[:, 0, :, :], (1, 2, 0)).reshape(9, Cin)   # (9, Cin), kt = kh*3+kw
    dwt = jnp.tile(dwt, (1, W))                                        # (9, W*Cin)
    dwb = jnp.tile(dw_b.reshape(1, Cin), (1, W))                       # (1, W*Cin)
    pw_mat = jnp.transpose(pw_w[:, :, 0, 0], (1, 0))                   # (Cin, Cout)
    pw_bd = jnp.einsum("wx,co->wcxo", jnp.eye(W, dtype=pw_mat.dtype),
                       pw_mat).reshape(WCin, WCout)                    # block-diagonal
    pwb = jnp.tile(pw_b.reshape(1, Cout), (1, W))                      # (1, W*Cout)
    # TODO(synk): for large Cin/Cout (>=128) or very wide W, switch the pointwise to a
    # channels-on-lanes (rows, Cin) @ (Cin, Cout) MXU path (bf16 on v6e/v7x) instead of
    # the block-diagonal trick, which is tuned for this module's small channel counts.

    in_block = (TH + 2) * WpC * 4
    out_block = TH * WCout * 4
    w_bytes = (9 * WCin + WCin + WCin * WCout + WCout) * 4
    vmem_limit = int(min(60 * 1024 * 1024,
                         max(16 * 1024 * 1024,
                             2 * (in_block + out_block) + w_bytes + (4 << 20))))

    out = pl.pallas_call(
        _make_dwsep_kernel(Cin),
        out_shape=jax.ShapeDtypeStruct((B, n_strips, TH, WCout), x_nchw.dtype),
        grid_spec=pltpu.PrefetchScalarGridSpec(
            num_scalar_prefetch=0,
            grid=(B, n_strips),
            in_specs=[
                pl.BlockSpec((None, None, TH + 2, WpC), lambda b, s: (b, s, 0, 0)),
                pl.BlockSpec((9, WCin), lambda b, s: (0, 0)),
                pl.BlockSpec((1, WCin), lambda b, s: (0, 0)),
                pl.BlockSpec((WCin, WCout), lambda b, s: (0, 0)),
                pl.BlockSpec((1, WCout), lambda b, s: (0, 0)),
            ],
            out_specs=pl.BlockSpec((None, None, TH, WCout),
                                   lambda b, s: (b, s, 0, 0)),
        ),
        compiler_params=pltpu.CompilerParams(
            dimension_semantics=("parallel", "parallel"),
            vmem_limit_bytes=vmem_limit),
    )(x_strips, dwt, dwb, pw_bd, pwb)

    out = out.reshape(B, H_eff, W, Cout)[:, :H]          # (B, H, W, Cout)
    return jnp.transpose(out, (0, 3, 1, 2))              # back to NCHW


def _reference(x_nchw, dw_w, dw_b, pw_w, pw_b):
    """Pure-JAX reference (lax.conv_general_dilated) for validation."""
    dn = jax.lax.conv_dimension_numbers(x_nchw.shape, dw_w.shape,
                                        ("NCHW", "OIHW", "NCHW"))
    y = jax.lax.conv_general_dilated(
        x_nchw, dw_w, window_strides=(1, 1), padding=((1, 1), (1, 1)),
        dimension_numbers=dn, feature_group_count=x_nchw.shape[1])
    y = y + dw_b.reshape(1, -1, 1, 1)
    z = jax.lax.conv_general_dilated(
        y, pw_w, window_strides=(1, 1), padding=((0, 0), (0, 0)),
        dimension_numbers=dn)
    return z + pw_b.reshape(1, -1, 1, 1)


if __name__ == "__main__":
    B, Cin, Cout, H, W = 2, 4, 8, 16, 16
    key = jax.random.PRNGKey(0)
    k_x, k_dw, k_db, k_pw, k_pb = jax.random.split(key, 5)

    x = jax.random.normal(k_x, (B, Cin, H, W), jnp.float32)
    # Deterministic parameter init (shapes match nn.Conv2d in the module).
    dw_w = jax.random.normal(k_dw, (Cin, 1, 3, 3), jnp.float32) * 0.3
    dw_b = jax.random.normal(k_db, (Cin,), jnp.float32) * 0.1
    pw_w = jax.random.normal(k_pw, (Cout, Cin, 1, 1), jnp.float32) * 0.3
    pw_b = jax.random.normal(k_pb, (Cout,), jnp.float32) * 0.1

    out = depthwise_separable_conv2(x, dw_w, dw_b, pw_w, pw_b)
    out = jax.block_until_ready(out)

    ref = _reference(x, dw_w, dw_b, pw_w, pw_b)
    assert out.shape == (B, Cout, H, W)
    assert jnp.allclose(out, ref, atol=1e-4, rtol=1e-4), "mismatch vs reference"
    print("KERNEL_OK")
</pallas_src>

<mosaic_0001>
module attributes {stable_mosaic.version = 11 : i64} {
  func.func @kernel(%arg0: i32, %arg1: i32, %arg2: memref<1x1x18x72xf32, #tpu.memory_space<vmem>>, %arg3: memref<9x64xf32, #tpu.memory_space<vmem>>, %arg4: memref<1x64xf32, #tpu.memory_space<vmem>>, %arg5: memref<64x128xf32, #tpu.memory_space<vmem>>, %arg6: memref<1x128xf32, #tpu.memory_space<vmem>>, %arg7: memref<1x1x16x128xf32, #tpu.memory_space<vmem>>) attributes {dimension_semantics = [#tpu.dimension_semantics<parallel>, #tpu.dimension_semantics<parallel>], iteration_bounds = array<i64: 2, 1>, scalar_prefetch = 0 : i64, scratch_operands = 0 : i64, tpu.core_type = #tpu.core_type<tc>, window_params = [{transform_indices = @transform_0, window_bounds = array<i64: 1, 1, 18, 72>}, {pipeline_mode = #tpu.pipeline_mode<synchronous>, transform_indices = @transform_1, window_bounds = array<i64: 9, 64>}, {pipeline_mode = #tpu.pipeline_mode<synchronous>, transform_indices = @transform_2, window_bounds = array<i64: 1, 64>}, {pipeline_mode = #tpu.pipeline_mode<synchronous>, transform_indices = @transform_3, window_bounds = array<i64: 64, 128>}, {pipeline_mode = #tpu.pipeline_mode<synchronous>, transform_indices = @transform_4, window_bounds = array<i64: 1, 128>}, {transform_indices = @transform_5, window_bounds = array<i64: 1, 1, 16, 128>}]} {
    %cst = arith.constant 0.000000e+00 : f32
    %0 = vector.broadcast %cst : f32 to vector<16x64xf32>
    %c0 = arith.constant 0 : index
    %c0_0 = arith.constant 0 : index
    %1 = vector.load %arg4[%c0, %c0_0] : memref<1x64xf32, #tpu.memory_space<vmem>>, vector<1x64xf32>
    %2 = vector.broadcast %1 : vector<1x64xf32> to vector<16x64xf32>
    %3 = arith.addf %0, %2 : vector<16x64xf32>
    %c0_1 = arith.constant 0 : index
    %c0_2 = arith.constant 0 : index
    %c0_3 = arith.constant 0 : index
    %c0_4 = arith.constant 0 : index
    %4 = vector.load %arg2[%c0_1, %c0_2, %c0_3, %c0_4] : memref<1x1x18x72xf32, #tpu.memory_space<vmem>>, vector<1x1x16x64xf32>
    %5 = vector.shape_cast %4 : vector<1x1x16x64xf32> to vector<16x64xf32>
    %c0_5 = arith.constant 0 : index
    %c0_6 = arith.constant 0 : index
    %6 = vector.load %arg3[%c0_5, %c0_6] : memref<9x64xf32, #tpu.memory_space<vmem>>, vector<1x64xf32>
    %7 = vector.broadcast %6 : vector<1x64xf32> to vector<16x64xf32>
    %8 = arith.mulf %5, %7 : vector<16x64xf32>
    %9 = arith.addf %3, %8 : vector<16x64xf32>
    %c0_7 = arith.constant 0 : index
    %c0_8 = arith.constant 0 : index
    %c0_9 = arith.constant 0 : index
    %c4 = arith.constant 4 : index
    %10 = vector.load %arg2[%c0_7, %c0_8, %c0_9, %c4] : memref<1x1x18x72xf32, #tpu.memory_space<vmem>>, vector<1x1x16x64xf32>
    %11 = vector.shape_cast %10 : vector<1x1x16x64xf32> to vector<16x64xf32>
    %c1 = arith.constant 1 : index
    %c0_10 = arith.constant 0 : index
    %12 = vector.load %arg3[%c1, %c0_10] : memref<9x64xf32, #tpu.memory_space<vmem>>, vector<1x64xf32>
    %13 = vector.broadcast %12 : vector<1x64xf32> to vector<16x64xf32>
    %14 = arith.mulf %11, %13 : vector<16x64xf32>
    %15 = arith.addf %9, %14 : vector<16x64xf32>
    %c0_11 = arith.constant 0 : index
    %c0_12 = arith.constant 0 : index
    %c0_13 = arith.constant 0 : index
    %c8 = arith.constant 8 : index
    %16 = vector.load %arg2[%c0_11, %c0_12, %c0_13, %c8] : memref<1x1x18x72xf32, #tpu.memory_space<vmem>>, vector<1x1x16x64xf32>
    %17 = vector.shape_cast %16 : vector<1x1x16x64xf32> to vector<16x64xf32>
    %c2 = arith.constant 2 : index
    %c0_14 = arith.constant 0 : index
    %18 = vector.load %arg3[%c2, %c0_14] : memref<9x64xf32, #tpu.memory_space<vmem>>, vector<1x64xf32>
    %19 = vector.broadcast %18 : vector<1x64xf32> to vector<16x64xf32>
    %20 = arith.mulf %17, %19 : vector<16x64xf32>
    %21 = arith.addf %15, %20 : vector<16x64xf32>
    %c0_15 = arith.constant 0 : index
    %c0_16 = arith.constant 0 : index
    %c1_17 = arith.constant 1 : index
    %c0_18 = arith.constant 0 : index
    %22 = vector.load %arg2[%c0_15, %c0_16, %c1_17, %c0_18] : memref<1x1x18x72xf32, #tpu.memory_space<vmem>>, vector<1x1x16x64xf32>
    %23 = vector.shape_cast %22 : vector<1x1x16x64xf32> to vector<16x64xf32>
    %c3 = arith.constant 3 : index
    %c0_19 = arith.constant 0 : index
    %24 = vector.load %arg3[%c3, %c0_19] : memref<9x64xf32, #tpu.memory_space<vmem>>, vector<1x64xf32>
    %25 = vector.broadcast %24 : vector<1x64xf32> to vector<16x64xf32>
    %26 = arith.mulf %23, %25 : vector<16x64xf32>
    %27 = arith.addf %21, %26 : vector<16x64xf32>
    %c0_20 = arith.constant 0 : index
    %c0_21 = arith.constant 0 : index
    %c1_22 = arith.constant 1 : index
    %c4_23 = arith.constant 4 : index
    %28 = vector.load %arg2[%c0_20, %c0_21, %c1_22, %c4_23] : memref<1x1x18x72xf32, #tpu.memory_space<vmem>>, vector<1x1x16x64xf32>
    %29 = vector.shape_cast %28 : vector<1x1x16x64xf32> to vector<16x64xf32>
    %c4_24 = arith.constant 4 : index
    %c0_25 = arith.constant 0 : index
    %30 = vector.load %arg3[%c4_24, %c0_25] : memref<9x64xf32, #tpu.memory_space<vmem>>, vector<1x64xf32>
    %31 = vector.broadcast %30 : vector<1x64xf32> to vector<16x64xf32>
    %32 = arith.mulf %29, %31 : vector<16x64xf32>
    %33 = arith.addf %27, %32 : vector<16x64xf32>
    %c0_26 = arith.constant 0 : index
    %c0_27 = arith.constant 0 : index
    %c1_28 = arith.constant 1 : index
    %c8_29 = arith.constant 8 : index
    %34 = vector.load %arg2[%c0_26, %c0_27, %c1_28, %c8_29] : memref<1x1x18x72xf32, #tpu.memory_space<vmem>>, vector<1x1x16x64xf32>
    %35 = vector.shape_cast %34 : vector<1x1x16x64xf32> to vector<16x64xf32>
    %c5 = arith.constant 5 : index
    %c0_30 = arith.constant 0 : index
    %36 = vector.load %arg3[%c5, %c0_30] : memref<9x64xf32, #tpu.memory_space<vmem>>, vector<1x64xf32>
    %37 = vector.broadcast %36 : vector<1x64xf32> to vector<16x64xf32>
    %38 = arith.mulf %35, %37 : vector<16x64xf32>
    %39 = arith.addf %33, %38 : vector<16x64xf32>
    %c0_31 = arith.constant 0 : index
    %c0_32 = arith.constant 0 : index
    %c2_33 = arith.constant 2 : index
    %c0_34 = arith.constant 0 : index
    %40 = vector.load %arg2[%c0_31, %c0_32, %c2_33, %c0_34] : memref<1x1x18x72xf32, #tpu.memory_space<vmem>>, vector<1x1x16x64xf32>
    %41 = vector.shape_cast %40 : vector<1x1x16x64xf32> to vector<16x64xf32>
    %c6 = arith.constant 6 : index
    %c0_35 = arith.constant 0 : index
    %42 = vector.load %arg3[%c6, %c0_35] : memref<9x64xf32, #tpu.memory_space<vmem>>, vector<1x64xf32>
    %43 = vector.broadcast %42 : vector<1x64xf32> to vector<16x64xf32>
    %44 = arith.mulf %41, %43 : vector<16x64xf32>
    %45 = arith.addf %39, %44 : vector<16x64xf32>
    %c0_36 = arith.constant 0 : index
    %c0_37 = arith.constant 0 : index
    %c2_38 = arith.constant 2 : index
    %c4_39 = arith.constant 4 : index
    %46 = vector.load %arg2[%c0_36, %c0_37, %c2_38, %c4_39] : memref<1x1x18x72xf32, #tpu.memory_space<vmem>>, vector<1x1x16x64xf32>
    %47 = vector.shape_cast %46 : vector<1x1x16x64xf32> to vector<16x64xf32>
    %c7 = arith.constant 7 : index
    %c0_40 = arith.constant 0 : index
    %48 = vector.load %arg3[%c7, %c0_40] : memref<9x64xf32, #tpu.memory_space<vmem>>, vector<1x64xf32>
    %49 = vector.broadcast %48 : vector<1x64xf32> to vector<16x64xf32>
    %50 = arith.mulf %47, %49 : vector<16x64xf32>
    %51 = arith.addf %45, %50 : vector<16x64xf32>
    %c0_41 = arith.constant 0 : index
    %c0_42 = arith.constant 0 : index
    %c2_43 = arith.constant 2 : index
    %c8_44 = arith.constant 8 : index
    %52 = vector.load %arg2[%c0_41, %c0_42, %c2_43, %c8_44] : memref<1x1x18x72xf32, #tpu.memory_space<vmem>>, vector<1x1x16x64xf32>
    %53 = vector.shape_cast %52 : vector<1x1x16x64xf32> to vector<16x64xf32>
    %c8_45 = arith.constant 8 : index
    %c0_46 = arith.constant 0 : index
    %54 = vector.load %arg3[%c8_45, %c0_46] : memref<9x64xf32, #tpu.memory_space<vmem>>, vector<1x64xf32>
    %55 = vector.broadcast %54 : vector<1x64xf32> to vector<16x64xf32>
    %56 = arith.mulf %53, %55 : vector<16x64xf32>
    %57 = arith.addf %51, %56 : vector<16x64xf32>
    %c0_47 = arith.constant 0 : index
    %c0_48 = arith.constant 0 : index
    %58 = vector.load %arg5[%c0_47, %c0_48] : memref<64x128xf32, #tpu.memory_space<vmem>>, vector<64x128xf32>
    %cst_49 = arith.constant dense<0.000000e+00> : vector<16x128xf32>
    %59 = tpu.matmul %57, %58, %cst_49 {dimension_numbers = #tpu.dot_dimension_numbers<[1], [0], [0], [1], [0, 0, 1, 1], [], []>} : vector<16x64xf32>, vector<64x128xf32>, vector<16x128xf32> -> vector<16x128xf32>
    %c0_50 = arith.constant 0 : index
    %c0_51 = arith.constant 0 : index
    %60 = vector.load %arg6[%c0_50, %c0_51] : memref<1x128xf32, #tpu.memory_space<vmem>>, vector<1x128xf32>
    %61 = vector.broadcast %60 : vector<1x128xf32> to vector<16x128xf32>
    %62 = arith.addf %59, %61 : vector<16x128xf32>
    %c0_52 = arith.constant 0 : index
    %c0_53 = arith.constant 0 : index
    %c0_54 = arith.constant 0 : index
    %c0_55 = arith.constant 0 : index
    %63 = vector.load %arg7[%c0_52, %c0_53, %c0_54, %c0_55] : memref<1x1x16x128xf32, #tpu.memory_space<vmem>>, vector<1x1x16x128xf32>
    %64 = vector.shape_cast %63 : vector<1x1x16x128xf32> to vector<16x128xf32>
    %65 = vector.shape_cast %62 : vector<16x128xf32> to vector<1x1x16x128xf32>
    tpu.vector_store %arg7[%c0_52, %c0_53, %c0_54, %c0_55], %65 {strides = array<i32>} : memref<1x1x16x128xf32, #tpu.memory_space<vmem>>, vector<1x1x16x128xf32>,
    return
  }
  func.func @transform_0(%arg0: i32, %arg1: i32) -> (i32, i32, i32, i32) {
    %c0_i32 = arith.constant 0 : i32
    %c0_i32_0 = arith.constant 0 : i32
    %c0_i32_1 = arith.constant 0 : i32
    return %arg0, %arg1, %c0_i32, %c0_i32_0 : i32, i32, i32, i32
  }
  func.func @transform_1(%arg0: i32, %arg1: i32) -> (i32, i32) {
    %c0_i32 = arith.constant 0 : i32
    %c0_i32_0 = arith.constant 0 : i32
    %c0_i32_1 = arith.constant 0 : i32
    return %c0_i32, %c0_i32_0 : i32, i32
  }
  func.func @transform_2(%arg0: i32, %arg1: i32) -> (i32, i32) {
    %c0_i32 = arith.constant 0 : i32
    %c0_i32_0 = arith.constant 0 : i32
    %c0_i32_1 = arith.constant 0 : i32
    return %c0_i32, %c0_i32_0 : i32, i32
  }
  func.func @transform_3(%arg0: i32, %arg1: i32) -> (i32, i32) {
    %c0_i32 = arith.constant 0 : i32
    %c0_i32_0 = arith.constant 0 : i32
    %c0_i32_1 = arith.constant 0 : i32
    return %c0_i32, %c0_i32_0 : i32, i32
  }
  func.func @transform_4(%arg0: i32, %arg1: i32) -> (i32, i32) {
    %c0_i32 = arith.constant 0 : i32
    %c0_i32_0 = arith.constant 0 : i32
    %c0_i32_1 = arith.constant 0 : i32
    return %c0_i32, %c0_i32_0 : i32, i32
  }
  func.func @transform_5(%arg0: i32, %arg1: i32) -> (i32, i32, i32, i32) {
    %c0_i32 = arith.constant 0 : i32
    %c0_i32_0 = arith.constant 0 : i32
    %c0_i32_1 = arith.constant 0 : i32
    return %arg0, %arg1, %c0_i32, %c0_i32_0 : i32, i32, i32, i32
  }
}

</mosaic_0001>

<llo_original>
// kernel: tpu_custom_call.1
$region0: #{tpu_custom_call.1}
  #allocation0 [shape = 'u32[]', space=smem, size = 0x4, offset = 0x4, fixed_abs, tag = 'smem constant byte address 0x4 - core index']
  #allocation1 [shape = 'u32[144,128]{1,0:T(1,128)}', space=vmem, size = 0x12000, scoped, tag = 'internal scratch']
  %s0 = inlined_call_operand.vmem [shape: f32[2,1,18,72], index: 0, kind: input, shape index: {}]
  %s1 = inlined_call_operand.vmem [shape: f32[9,64], index: 1, kind: input, shape index: {}]
  %s2 = inlined_call_operand.vmem [shape: f32[1,64], index: 2, kind: input, shape index: {}]
  %s3 = inlined_call_operand.vmem [shape: f32[64,128], index: 3, kind: input, shape index: {}]
  %s4 = inlined_call_operand.vmem [shape: f32[1,128], index: 4, kind: input, shape index: {}]
  %s5 = inlined_call_operand.hbm [shape: f32[2,1,16,128], index: 5, kind: output, shape index: {}]
  %s6 = sld [smem:[#allocation0]]
  $region53: #{tpu_custom_call.1} parent=0
    _
  %s8 = ssub.s32 1, %s6
  %s9 = scalar_select 0, %s8, %s6
  $region1: #{tpu_custom_call.1} parent=0
    #allocation2 [shape = 'u8[16384]{0}', space=vmem, size = 0x4000, scoped, tag = 'output window, operand 0']
    #allocation3 [shape = 's32[2]{0}', space=sflag, size = 0x8, scoped, tag = 'scoped memory for tpu_custom_call.1']
    %10 = vsyncpa [#allocation3], 0
    %s11 = scalar_lea.sflag [#allocation3], 1
    %12 = vsyncpa %s11, 0
    loop: start=0, step=1, limit=4
    $region2: #{tpu_custom_call.1} parent=1 // loop_pre_header
      _
    $region3: #{tpu_custom_call.1} parent=1 // loop_header
      %s14 = sphi 0, %s18
      %p15 = scmp.ge.s32.totalorder %s14, 4
      %s21 = sphi 0, %s33
      %s22 = sphi 0, %s29
      %s23 = sphi 0, %s21
      %s24 = sphi 0, %s22
      %s25 = sphi 0, %s23
      %s26 = sphi 0, %s24
      %s38 = sphi 0, %s40
      %s41 = sphi 0, %s38
      %s42 = sphi 0, %s41
      %s58 = sphi 0, %s42
      %s62 = sphi 0, %s62
      %s64 = sphi 0, %s62
      %s65 = sphi 0, %s64
      %s79 = sphi 0, %s65
      %s83 = sphi 0, %s83
      %s85 = sphi 0, %s83
      %s86 = sphi 0, %s85
      %s100 = sphi 0, %s86
      %s104 = sphi 0, %s104
      %s106 = sphi 0, %s104
      %s107 = sphi 0, %s106
      %s121 = sphi 0, %s107
      %s125 = sphi 0, %s125
      %s127 = sphi 0, %s125
      %s128 = sphi 0, %s127
      %s142 = sphi 0, %s128
      %s150 = sphi 0, %s152
      %s153 = sphi 0, %s150
      %s154 = sphi 0, %s153
      %s170 = sphi 0, %s154
    $region4: #{tpu_custom_call.1} parent=1 // loop_header_branch
      %17 = sbr.rel (%p15) target = $region8
    $region5: #{tpu_custom_call.1} parent=1 // loop_body
      %s19 = ssub.s32 %s14, 1
      %s20 = ssub.s32 %s14, 2
      %s27 = sadd.s32 1, %s22
      %p28 = scmp.ge.s32.totalorder %s27, 1
      %s29 = scalar_select %p28, 0, %s27
      %s30 = sadd.s32 1, %s21
      %s31 = scalar_select %p28, %s30, %s21
      %p32 = scmp.ge.s32.totalorder %s31, 2
      %s33 = scalar_select %p32, 0, %s31
      %s34 = ssub.s32 %s21, %s33
      %s35 = ssub.s32 %s22, %s29
      %s36 = sor.u32 %s34, %s35
      %p37 = scmp.eq.s32.totalorder %s36, 0
      %s39 = sadd.s32 %s38, 1
      %s40 = scalar_select %p37, %s38, %s39
      %p43 = pneg %p37
      %p44 = scmp.eq.s32.totalorder %s14, 1
      %p45 = por %p43, %p44
      %p46 = scmp.ne.s32.totalorder %s38, %s41
      %p47 = scmp.eq.s32.totalorder %s14, 0
      %p48 = por %p46, %p47
      %p49 = scmp.ne.s32.totalorder %s38, %s41
      %p50 = scmp.eq.s32.totalorder %s19, 1
      %p51 = por %p49, %p50
      %p52 = scmp.ne.s32.totalorder %s41, %s42
      %p53 = scmp.eq.s32.totalorder %s19, 0
      %p54 = por %p52, %p53
      %p55 = scmp.ne.s32.totalorder %s41, %s42
      %p56 = scmp.eq.s32.totalorder %s20, 1
      %p57 = por %p55, %p56
      %p59 = scmp.ne.s32.totalorder %s42, %s58
      %p60 = scmp.eq.s32.totalorder %s20, 0
      %p61 = por %p59, %p60
      %s63 = sadd.s32 %s62, 1
      %p66 = scmp.eq.s32.totalorder %s14, 1
      %p67 = scmp.ne.s32.totalorder %s62, %s64
      %p68 = scmp.eq.s32.totalorder %s14, 0
      %p69 = por %p67, %p68
      %p70 = scmp.ne.s32.totalorder %s62, %s64
      %p71 = scmp.eq.s32.totalorder %s19, 1
      %p72 = por %p70, %p71
      %p73 = scmp.ne.s32.totalorder %s64, %s65
      %p74 = scmp.eq.s32.totalorder %s19, 0
      %p75 = por %p73, %p74
      %p76 = scmp.ne.s32.totalorder %s64, %s65
      %p77 = scmp.eq.s32.totalorder %s20, 1
      %p78 = por %p76, %p77
      %p80 = scmp.ne.s32.totalorder %s65, %s79
      %p81 = scmp.eq.s32.totalorder %s20, 0
      %p82 = por %p80, %p81
      %s84 = sadd.s32 %s83, 1
      %p87 = scmp.eq.s32.totalorder %s14, 1
      %p88 = scmp.ne.s32.totalorder %s83, %s85
      %p89 = scmp.eq.s32.totalorder %s14, 0
      %p90 = por %p88, %p89
      %p91 = scmp.ne.s32.totalorder %s83, %s85
      %p92 = scmp.eq.s32.totalorder %s19, 1
      %p93 = por %p91, %p92
      %p94 = scmp.ne.s32.totalorder %s85, %s86
      %p95 = scmp.eq.s32.totalorder %s19, 0
      %p96 = por %p94, %p95
      %p97 = scmp.ne.s32.totalorder %s85, %s86
      %p98 = scmp.eq.s32.totalorder %s20, 1
      %p99 = por %p97, %p98
      %p101 = scmp.ne.s32.totalorder %s86, %s100
      %p102 = scmp.eq.s32.totalorder %s20, 0
      %p103 = por %p101, %p102
      %s105 = sadd.s32 %s104, 1
      %p108 = scmp.eq.s32.totalorder %s14, 1
      %p109 = scmp.ne.s32.totalorder %s104, %s106
      %p110 = scmp.eq.s32.totalorder %s14, 0
      %p111 = por %p109, %p110
      %p112 = scmp.ne.s32.totalorder %s104, %s106
      %p113 = scmp.eq.s32.totalorder %s19, 1
      %p114 = por %p112, %p113
      %p115 = scmp.ne.s32.totalorder %s106, %s107
      %p116 = scmp.eq.s32.totalorder %s19, 0
      %p117 = por %p115, %p116
      %p118 = scmp.ne.s32.totalorder %s106, %s107
      %p119 = scmp.eq.s32.totalorder %s20, 1
      %p120 = por %p118, %p119
      %p122 = scmp.ne.s32.totalorder %s107, %s121
      %p123 = scmp.eq.s32.totalorder %s20, 0
      %p124 = por %p122, %p123
      %s126 = sadd.s32 %s125, 1
      %p129 = scmp.eq.s32.totalorder %s14, 1
      %p130 = scmp.ne.s32.totalorder %s125, %s127
      %p131 = scmp.eq.s32.totalorder %s14, 0
      %p132 = por %p130, %p131
      %p133 = scmp.ne.s32.totalorder %s125, %s127
      %p134 = scmp.eq.s32.totalorder %s19, 1
      %p135 = por %p133, %p134
      %p136 = scmp.ne.s32.totalorder %s127, %s128
      %p137 = scmp.eq.s32.totalorder %s19, 0
      %p138 = por %p136, %p137
      %p139 = scmp.ne.s32.totalorder %s127, %s128
      %p140 = scmp.eq.s32.totalorder %s20, 1
      %p141 = por %p139, %p140
      %p143 = scmp.ne.s32.totalorder %s128, %s142
      %p144 = scmp.eq.s32.totalorder %s20, 0
      %p145 = por %p143, %p144
      %s146 = ssub.s32 %s21, %s33
      %s147 = ssub.s32 %s22, %s29
      %s148 = sor.u32 %s146, %s147
      %p149 = scmp.eq.s32.totalorder %s148, 0
      %s151 = sadd.s32 %s150, 1
      %s152 = scalar_select %p149, %s150, %s151
      %p155 = pneg %p149
      %p156 = scmp.eq.s32.totalorder %s14, 1
      %p157 = por %p155, %p156
      %p158 = scmp.ne.s32.totalorder %s150, %s153
      %p159 = scmp.eq.s32.totalorder %s14, 0
      %p160 = por %p158, %p159
      %p161 = scmp.ne.s32.totalorder %s150, %s153
      %p162 = scmp.eq.s32.totalorder %s19, 1
      %p163 = por %p161, %p162
      %p164 = scmp.ne.s32.totalorder %s153, %s154
      %p165 = scmp.eq.s32.totalorder %s19, 0
      %p166 = por %p164, %p165
      %p167 = scmp.ne.s32.totalorder %s153, %s154
      %p168 = scmp.eq.s32.totalorder %s20, 1
      %p169 = por %p167, %p168
      %p171 = scmp.ne.s32.totalorder %s154, %s170
      %p172 = scmp.eq.s32.totalorder %s20, 0
      %p173 = por %p171, %p172
      %p174 = scmp.le.s32.totalorder 1, %s14
      %p175 = scmp.lt.s32.totalorder %s14, 3
      %p176 = pnand %p174, %p175
      %p177 = pneg %p176
      // Predicated region
      $region9: #{tpu_custom_call.1} parent=5 // pred_check
        _
      $region10: #{tpu_custom_call.1} parent=5 // pred_check_branch
        %179 = sbr.rel (%p176) target = $region12
      $region11: #{tpu_custom_call.1} parent=5 // pred_region
        %s180 = ssub.s32 %s14, 1
        // Predicated region
        $region13: #{tpu_custom_call.1} parent=11 // pred_check
          %p181 = pneg %p75
        $region14: #{tpu_custom_call.1} parent=11 // pred_check_branch
          %183 = sbr.rel (%p181) target = $region16
        $region15: #{tpu_custom_call.1} parent=11 // pred_region
          _
        $region16: #{tpu_custom_call.1} parent=11 // pred_fallthru
          _
        // Predicated region
        $region17: #{tpu_custom_call.1} parent=11 // pred_check
          %p184 = pneg %p96
        $region18: #{tpu_custom_call.1} parent=11 // pred_check_branch
          %186 = sbr.rel (%p184) target = $region20
        $region19: #{tpu_custom_call.1} parent=11 // pred_region
          _
        $region20: #{tpu_custom_call.1} parent=11 // pred_fallthru
          _
        // Predicated region
        $region21: #{tpu_custom_call.1} parent=11 // pred_check
          %p187 = pneg %p117
        $region22: #{tpu_custom_call.1} parent=11 // pred_check_branch
          %189 = sbr.rel (%p187) target = $region24
        $region23: #{tpu_custom_call.1} parent=11 // pred_region
          _
        $region24: #{tpu_custom_call.1} parent=11 // pred_fallthru
          _
        // Predicated region
        $region25: #{tpu_custom_call.1} parent=11 // pred_check
          %p190 = pneg %p138
        $region26: #{tpu_custom_call.1} parent=11 // pred_check_branch
          %192 = sbr.rel (%p190) target = $region28
        $region27: #{tpu_custom_call.1} parent=11 // pred_region
          _
        $region28: #{tpu_custom_call.1} parent=11 // pred_fallthru
          _
      $region12: #{tpu_custom_call.1} parent=5 // pred_fallthru
        _
      %p193 = scmp.lt.s32.totalorder %s14, 2
      // Predicated region
      $region29: #{tpu_custom_call.1} parent=5 // pred_check
        %p194 = pneg %p193
      $region30: #{tpu_custom_call.1} parent=5 // pred_check_branch
        %196 = sbr.rel (%p194) target = $region32
      $region31: #{tpu_custom_call.1} parent=5 // pred_region
        // Predicated region
        $region33: #{tpu_custom_call.1} parent=31 // pred_check
          %p197 = pneg %p48
        $region34: #{tpu_custom_call.1} parent=31 // pred_check_branch
          %199 = sbr.rel (%p197) target = $region36
        $region35: #{tpu_custom_call.1} parent=31 // pred_region
          %p200 = scmp.lt.s32.totalorder %s21, 1
          %s201 = scalar_select %p200, %s21, 1
          %p202 = scmp.lt.s32.totalorder %s22, 0
          %s203 = scalar_select %p202, %s22, 0
          %s204 = smul.addr %s203, 3
          %s205 = smul.addr %s201, 3
          %s206 = sadd.s32 %s204, %s205
          %s207 = smul.addr %s206, 8
          %s208 = scalar_lea.vmem %s0, %s207
        $region36: #{tpu_custom_call.1} parent=31 // pred_fallthru
          _
      $region32: #{tpu_custom_call.1} parent=5 // pred_fallthru
        _
      %p209 = scmp.le.s32.totalorder 1, %s14
      %p210 = scmp.lt.s32.totalorder %s14, 3
      %p211 = pnand %p209, %p210
      %p212 = pneg %p211
      // Predicated region
      $region37: #{tpu_custom_call.1} parent=5 // pred_check
        _
      $region38: #{tpu_custom_call.1} parent=5 // pred_check_branch
        %214 = sbr.rel (%p211) target = $region40
      $region39: #{tpu_custom_call.1} parent=5 // pred_region
        %s215 = ssub.s32 %s14, 1
        %p216 = scmp.lt.s32.totalorder %s23, 1
        %s217 = scalar_select %p216, %s23, 1
        %p218 = scmp.lt.s32.totalorder %s24, 0
        %s219 = scalar_select %p218, %s24, 0
        %s220 = smul.addr %s219, 3
        %s221 = smul.addr %s217, 3
        %s222 = sadd.s32 %s220, %s221
        %s223 = smul.addr %s222, 8
        %s224 = scalar_lea.vmem %s0, %s223
        %p225 = pneg %p54
        %p226 = pneg %p51
        %p227 = pneg %p75
        %p228 = pneg %p72
        %p229 = pneg %p96
        %p230 = pneg %p93
        %p231 = pneg %p117
        %p232 = pneg %p114
        %p233 = pneg %p138
        %p234 = pneg %p135
        %p235 = pneg %p166
        %p236 = pneg %p163
        %s237 = sand.u32 %s153, 1
        %s238 = scalar_lea.sflag [#allocation3], %s237
        %s239 = sand.u32 %s153, 1
        %s240 = smul.addr %s239, 16
        %s241 = scalar_lea.vmem [#allocation2], %s240
        %p242 = scmp.lt.s32.totalorder %s23, 1
        %s243 = scalar_select %p242, %s23, 1
        %p244 = scmp.lt.s32.totalorder %s24, 0
        %s245 = scalar_select %p244, %s24, 0
        %s246 = smul.addr %s245, 3
        %s247 = smul.addr %s243, 3
        %s248 = sadd.s32 %s246, %s247
        %s249 = smul.addr %s248, 8
        %s250 = scalar_lea.vmem %s0, %s249
        %v251 = vld [vmem:[%s2] sm:$0x1]
        %v253 = vlaneseq
        %v254 = vshrl.u32 %v253, 7
        %v255 = vsub.s32 0, %v254
        %v256 = vrot.slane %v251, %v255
        %v258 = vadd.f32 %v256, 0.0
        %v259 = vld [vmem:[%s250] sm:$0xff]
        %v260 = vld [vmem:[%s250 + $0x8] sm:$0xff]
        %v261 = vld [vmem:[%s1] sm:$0x1]
        %v262 = vlaneseq
        %v263 = vshrl.u32 %v262, 7
        %v264 = vsub.s32 0, %v263
        %v265 = vrot.slane %v261, %v264
        %v266 = vmul.f32 %v259, %v265
        %v267 = vmul.f32 %v260, %v265
        %v268 = vadd.f32 %v258, %v266
        %v269 = vadd.f32 %v258, %v267
        %v270 = vld [vmem:[%s1 + $0x1] sm:$0x1]
        %v271 = vlaneseq
        %v272 = vshrl.u32 %v271, 7
        %v273 = vsub.s32 0, %v272
        %v274 = vrot.slane %v270, %v273
        %276 = vrot.lane.b32.xlu0 %v274, 4
        %v277 = vpop.permute.xlu0 %276
        %v279 = vmul.f32 %v259, %v277
        %v280 = vmul.f32 %v260, %v277
        %283 = vrot.lane.b32.xlu0 %v279, 124
        %v284 = vpop.permute.xlu0 %283
        %285 = vrot.lane.b32.xlu0 %v280, 124
        %v286 = vpop.permute.xlu0 %285
        %v289 = vadd.f32 %v268, %v284
        %v290 = vadd.f32 %v269, %v286
        %v291 = vld [vmem:[%s1 + $0x2] sm:$0x1]
        %v292 = vlaneseq
        %v293 = vshrl.u32 %v292, 7
        %v294 = vsub.s32 0, %v293
        %v295 = vrot.slane %v291, %v294
        %297 = vrot.lane.b32.xlu0 %v295, 8
        %v298 = vpop.permute.xlu0 %297
        %v300 = vmul.f32 %v259, %v298
        %v301 = vmul.f32 %v260, %v298
        %304 = vrot.lane.b32.xlu0 %v300, 120
        %v305 = vpop.permute.xlu0 %304
        %306 = vrot.lane.b32.xlu0 %v301, 120
        %v307 = vpop.permute.xlu0 %306
        %v310 = vadd.f32 %v289, %v305
        %v311 = vadd.f32 %v290, %v307
        %v312 = vld [vmem:[%s250 + $0x1] sm:$0xff]
        %v313 = vld [vmem:[%s250 + $0x9] sm:$0xff]
        %v314 = vld [vmem:[%s1 + $0x3] sm:$0x1]
        %v315 = vlaneseq
        %v316 = vshrl.u32 %v315, 7
        %v317 = vsub.s32 0, %v316
        %v318 = vrot.slane %v314, %v317
        %v319 = vmul.f32 %v312, %v318
        %v320 = vmul.f32 %v313, %v318
        %v321 = vadd.f32 %v310, %v319
        %v322 = vadd.f32 %v311, %v320
        %v323 = vld [vmem:[%s1 + $0x4] sm:$0x1]
        %v324 = vlaneseq
        %v325 = vshrl.u32 %v324, 7
        %v326 = vsub.s32 0, %v325
        %v327 = vrot.slane %v323, %v326
        %329 = vrot.lane.b32.xlu0 %v327, 4
        %v330 = vpop.permute.xlu0 %329
        %v332 = vmul.f32 %v312, %v330
        %v333 = vmul.f32 %v313, %v330
        %336 = vrot.lane.b32.xlu0 %v332, 124
        %v337 = vpop.permute.xlu0 %336
        %338 = vrot.lane.b32.xlu0 %v333, 124
        %v339 = vpop.permute.xlu0 %338
        %v342 = vadd.f32 %v321, %v337
        %v343 = vadd.f32 %v322, %v339
        %v344 = vld [vmem:[%s1 + $0x5] sm:$0x1]
        %v345 = vlaneseq
        %v346 = vshrl.u32 %v345, 7
        %v347 = vsub.s32 0, %v346
        %v348 = vrot.slane %v344, %v347
        %350 = vrot.lane.b32.xlu0 %v348, 8
        %v351 = vpop.permute.xlu0 %350
        %v353 = vmul.f32 %v312, %v351
        %v354 = vmul.f32 %v313, %v351
        %357 = vrot.lane.b32.xlu0 %v353, 120
        %v358 = vpop.permute.xlu0 %357
        %359 = vrot.lane.b32.xlu0 %v354, 120
        %v360 = vpop.permute.xlu0 %359
        %v363 = vadd.f32 %v342, %v358
        %v364 = vadd.f32 %v343, %v360
        %v365 = vld [vmem:[%s250 + $0x2] sm:$0xff]
        %v366 = vld [vmem:[%s250 + $0xa] sm:$0xff]
        %v367 = vld [vmem:[%s1 + $0x6] sm:$0x1]
        %v368 = vlaneseq
        %v369 = vshrl.u32 %v368, 7
        %v370 = vsub.s32 0, %v369
        %v371 = vrot.slane %v367, %v370
        %v372 = vmul.f32 %v365, %v371
        %v373 = vmul.f32 %v366, %v371
        %v374 = vadd.f32 %v363, %v372
        %v375 = vadd.f32 %v364, %v373
        %v376 = vld [vmem:[%s1 + $0x7] sm:$0x1]
        %v377 = vlaneseq
        %v378 = vshrl.u32 %v377, 7
        %v379 = vsub.s32 0, %v378
        %v380 = vrot.slane %v376, %v379
        %382 = vrot.lane.b32.xlu0 %v380, 4
        %v383 = vpop.permute.xlu0 %382
        %v385 = vmul.f32 %v365, %v383
        %v386 = vmul.f32 %v366, %v383
        %389 = vrot.lane.b32.xlu0 %v385, 124
        %v390 = vpop.permute.xlu0 %389
        %391 = vrot.lane.b32.xlu0 %v386, 124
        %v392 = vpop.permute.xlu0 %391
        %v395 = vadd.f32 %v374, %v390
        %v396 = vadd.f32 %v375, %v392
        %v397 = vld [vmem:[%s1 + $0x8] sm:$0x1]
        %v398 = vlaneseq
        %v399 = vshrl.u32 %v398, 7
        %v400 = vsub.s32 0, %v399
        %v401 = vrot.slane %v397, %v400
        %403 = vrot.lane.b32.xlu0 %v401, 8
        %v404 = vpop.permute.xlu0 %403
        %v406 = vmul.f32 %v365, %v404
        %v407 = vmul.f32 %v366, %v404
        %410 = vrot.lane.b32.xlu0 %v406, 120
        %v411 = vpop.permute.xlu0 %410
        %412 = vrot.lane.b32.xlu0 %v407, 120
        %v413 = vpop.permute.xlu0 %412
        %v416 = vadd.f32 %v395, %v411
        %v417 = vadd.f32 %v396, %v413
        %v418 = vld [vmem:[%s3] sm:$0xff]
        %v419 = vld [vmem:[%s3 + $0x8] sm:$0xff]
        %v420 = vld [vmem:[%s3 + $0x10] sm:$0xff]
        %v421 = vld [vmem:[%s3 + $0x18] sm:$0xff]
        %v422 = vld [vmem:[%s3 + $0x20] sm:$0xff]
        %v423 = vld [vmem:[%s3 + $0x28] sm:$0xff]
        %v424 = vld [vmem:[%s3 + $0x30] sm:$0xff]
        %v425 = vld [vmem:[%s3 + $0x38] sm:$0xff]
        %v426 = vld [vmem:[%s4] sm:$0x1]
        %v428 = vlaneseq
        %v429 = vshrl.u32 %v428, 7
        %v430 = vsub.s32 0, %v429
        %v431 = vrot.slane %v426, %v430
        %vm433 = vcmask 523264
        %v435 = vsel %vm433, %v416, 0
        %v438 = vsel %vm433, %v417, 0
        %440 = vmatprep.subr.mxu0 0.0
        %441 = vmatpush1.msra.mxu0 0.0
        %442 = vmatprep.subr.mxu0 0.0
        %443 = vmatpush1.msra.mxu0 0.0
        %444 = vmatprep.subr.mxu0 0.0
        %445 = vmatpush1.msra.mxu0 0.0
        %446 = vmatprep.subr.mxu0 0.0
        %447 = vmatpush1.msra.mxu0 0.0
        %448 = vmatprep.subr.mxu0 0.0
        %449 = vmatpush1.msra.mxu0 0.0
        %450 = vmatprep.subr.mxu0 0.0
        %451 = vmatpush1.msra.mxu0 0.0
        %452 = vmatprep.subr.mxu0 0.0
        %453 = vmatpush1.msra.mxu0 0.0
        %454 = vmatprep.subr.mxu0 0.0
        %455 = vmatpush1.msra.mxu0 0.0
        %456 = vmatprep.subr.mxu0 0.0
        %457 = vmatpush1.msra.mxu0 %v425
        %458 = vmatprep.subr.mxu0 0.0
        %459 = vmatpush1.msra.mxu0 %v424
        %460 = vmatprep.subr.mxu0 0.0
        %461 = vmatpush1.msra.mxu0 %v423
        %462 = vmatprep.subr.mxu0 0.0
        %463 = vmatpush1.msra.mxu0 %v422
        %464 = vmatprep.subr.mxu0 0.0
        %465 = vmatpush1.msra.mxu0 %v421
        %466 = vmatprep.subr.mxu0 0.0
        %467 = vmatpush1.msra.mxu0 %v420
        %468 = vmatprep.subr.mxu0 0.0
        %469 = vmatpush1.msra.mxu0 %v419
        %470 = vmatprep.subr.mxu0 0.0
        %471 = vmatpush1.msra.mxu0 %v418
        %472 = vmatprep.subr.mxu0 0.0
        %473 = vmatpush2.msra.mxu0 0.0
        %474 = vmatprep.subr.mxu0 0.0
        %475 = vmatpush2.msra.mxu0 0.0
        %476 = vmatprep.subr.mxu0 0.0
        %477 = vmatpush2.msra.mxu0 0.0
        %478 = vmatprep.subr.mxu0 0.0
        %479 = vmatpush2.msra.mxu0 0.0
        %480 = vmatprep.subr.mxu0 0.0
        %481 = vmatpush2.msra.mxu0 0.0
        %482 = vmatprep.subr.mxu0 0.0
        %483 = vmatpush2.msra.mxu0 0.0
        %484 = vmatprep.subr.mxu0 0.0
        %485 = vmatpush2.msra.mxu0 0.0
        %486 = vmatprep.subr.mxu0 0.0
        %487 = vmatpush2.msra.mxu0 0.0
        %488 = vmatprep.subr.mxu0 0.0
        %489 = vmatpush2.msra.mxu0 0.0
        %490 = vmatprep.subr.mxu0 0.0
        %491 = vmatpush2.msra.mxu0 0.0
        %492 = vmatprep.subr.mxu0 0.0
        %493 = vmatpush2.msra.mxu0 0.0
        %494 = vmatprep.subr.mxu0 0.0
        %495 = vmatpush2.msra.mxu0 0.0
        %496 = vmatprep.subr.mxu0 0.0
        %497 = vmatpush2.msra.mxu0 0.0
        %498 = vmatprep.subr.mxu0 0.0
        %499 = vmatpush2.msra.mxu0 0.0
        %500 = vmatprep.subr.mxu0 0.0
        %501 = vmatpush2.msra.mxu0 0.0
        %502 = vmatprep.subr.mxu0 0.0
        %503 = vmatpush2.msra.mxu0 0.0
        %504 = vmatprep.mubr.f32.mxu0 0.0
        %505 = vmatmul.mubr.f32.gmra.mxu0 %v435
        %v506 = vpop.f32.mrf.mxu0
        %v507 = vadd.f32 %v431, %v506
        %v508 = vpop.f32.mrf.mxu0
        %509 = vmatprep.mubr.f32.mxu0 0.0
        %510 = vmatmul.mubr.f32.gmra.mxu0 %v438
        %v511 = vpop.f32.mrf.mxu0
        %v512 = vadd.f32 %v431, %v511
        %v513 = vpop.f32.mrf.mxu0
        %514 = vdwg.mxu0
        %515 = vst [vmem:[%s241] sm:$0xff] %v507
        %516 = vst [vmem:[%s241 + $0x8] sm:$0xff] %v512
        %s517 = sand.u32 %s153, 1
        %s518 = scalar_lea.sflag [#allocation3], %s517
        %s519 = sand.u32 %s153, 1
        %s520 = smul.addr %s519, 16
        %s521 = scalar_lea.vmem [#allocation2], %s520
        // Predicated region
        $region41: #{tpu_custom_call.1} parent=39 // pred_check
          %p522 = pneg %p163
        $region42: #{tpu_custom_call.1} parent=39 // pred_check_branch
          %524 = sbr.rel (%p522) target = $region44
        $region43: #{tpu_custom_call.1} parent=39 // pred_region
          %s526 = ssub.s32 256, 256
          %527 = vsyncadd %s518, %s526
          %s528 = smul.addr %s24, 2
          %s529 = smul.addr %s23, 2
          %s530 = sadd.s32 %s528, %s529
          %s531 = smul.addr %s530, 128
          %s532 = scalar_lea.hbm %s5, %s531
          %s533 = sshll.u32 %s521, 4
          %s534 = int_to_ptr.vmem [resolvable:$true] %s533
          %539 = dma.vmem_to_hbm [thread:$0]  %s534, 256, %s532, %s518, 128, 128, 8
        $region44: #{tpu_custom_call.1} parent=39 // pred_fallthru
          _
      $region40: #{tpu_custom_call.1} parent=5 // pred_fallthru
        _
      %p540 = scmp.le.s32.totalorder 2, %s14
      // Predicated region
      $region45: #{tpu_custom_call.1} parent=5 // pred_check
        %p541 = pneg %p540
      $region46: #{tpu_custom_call.1} parent=5 // pred_check_branch
        %543 = sbr.rel (%p541) target = $region48
      $region47: #{tpu_custom_call.1} parent=5 // pred_region
        %s544 = ssub.s32 %s14, 2
        // Predicated region
        $region49: #{tpu_custom_call.1} parent=47 // pred_check
          %p545 = pneg %p169
        $region50: #{tpu_custom_call.1} parent=47 // pred_check_branch
          %547 = sbr.rel (%p545) target = $region52
        $region51: #{tpu_custom_call.1} parent=47 // pred_region
          %s548 = sand.u32 %s154, 1
          %s549 = scalar_lea.sflag [#allocation3], %s548
          %s550 = sand.u32 %s154, 1
          %s551 = smul.addr %s550, 16
          %s552 = scalar_lea.vmem [#allocation2], %s551
          %553 = dma.done %s549, 256
        $region52: #{tpu_custom_call.1} parent=47 // pred_fallthru
          _
      $region48: #{tpu_custom_call.1} parent=5 // pred_fallthru
        _
    $region6: #{tpu_custom_call.1} parent=1 // loop_footer
      %s18 = sadd.s32 1, %s14
    $region7: #{tpu_custom_call.1} parent=1 // loop_footer_branch
      %13 = sbr.rel target = $region3
    $region8: #{tpu_custom_call.1} parent=1 // loop_exit
      _
    %554 = vsyncpa [#allocation3], 1
    %s555 = scalar_lea.sflag [#allocation3], 1
    %556 = vsyncpa %s555, 1

</llo_original>
